<compile_context>
chip_gen: v7x
topology: tpu7x:2x2x1
jax: 0.10.0
libtpu: 0.0.40
codegen_flags: <defaults>
</compile_context>

<pallas_src>
import jax
import jax.numpy as jnp
from jax.experimental import pallas as pl
from jax.experimental.pallas import tpu as pltpu

# ----------------------------- problem sizes -----------------------------
BATCH = 256         # global number of token rows
TILE_M = 256        # batch rows per grid step -> grid=(1,) at BATCH=256
D_IN = 128          # in_features  (lane-dense: multiple of 128)
D_OUT = 128         # out_features (lane-dense: multiple of 128)
LORA_R = 8          # LoRA rank (only ever a narrow contraction dim in-kernel)
LORA_ALPHA = 16.0
LORA_SCALING = LORA_ALPHA / LORA_R
LOSS_SCALING_FACTOR = 1.0   # LoraTraining.loss_scaling_factor (default 1.0)

assert BATCH % TILE_M == 0 and TILE_M % 8 == 0
assert D_IN % 128 == 0 and D_OUT % 128 == 0
GRID_M = BATCH // TILE_M
INV_COUNT = 1.0 / float(BATCH * D_OUT)   # GLOBAL element count for MSE mean


# ------------------------------ Pallas kernel ------------------------------
def lora_forward_loss_kernel(
    x_ref,        # (TILE_M, D_IN)   f32  VMEM   block (i, 0)
    wT_ref,       # (D_IN, D_OUT)    bf16 VMEM   fixed (0, 0) — base W^T
    b_ref,        # (1, D_OUT)       f32  VMEM   fixed (0, 0) — bias row
    aT_ref,       # (D_IN, LORA_R)   bf16 VMEM   fixed (0, 0) — lora_A^T
    bT_ref,       # (LORA_R, D_OUT)  bf16 VMEM   fixed (0, 0) — lora_B^T
    labels_ref,   # (TILE_M, D_OUT)  f32  VMEM   block (i, 0)
    loss_ref,     # (1, 1)           f32  SMEM   out, fixed (0, 0)
    acc_ref,      # (TILE_M, D_OUT)  f32  VMEM   scratch (persists across grid)
):
    i = pl.program_id(0)

    # --- init phase: zero the vreg loss accumulator.
    @pl.when(i == 0)
    def _():
        acc_ref[...] = jnp.zeros_like(acc_ref)

    # In-kernel bf16 cast (VPU) — no separate XLA cast op in the wrapper.
    x_bf = x_ref[...].astype(jnp.bfloat16)

    # Base path: bf16 MXU matmul, f32 accumulation.
    base = jnp.dot(x_bf, wT_ref[...], preferred_element_type=jnp.float32)

    # LoRA correction as a separate small path, added in f32 so small learned
    # deltas are never absorbed below bf16-ulp(|W|) (review fidelity concern).
    xa = jnp.dot(x_bf, aT_ref[...], preferred_element_type=jnp.float32)      # (TILE_M, r)
    lora = jnp.dot(xa.astype(jnp.bfloat16), bT_ref[...],
                   preferred_element_type=jnp.float32)                        # (TILE_M, D_OUT)

    logits = base + LORA_SCALING * lora + b_ref[...]

    # --- loss: per-tile elementwise squared error into the VMEM accumulator.
    diff = logits - labels_ref[...]
    acc_ref[...] += diff * diff

    # --- finalize: single full reduce + scalar SMEM write, once.
    @pl.when(i == pl.num_programs(0) - 1)
    def _():
        loss_ref[0, 0] = jnp.sum(acc_ref[...]) * INV_COUNT

    # TODO(synk): v7x megacore — emit per-tile partial losses to a lane-dense
    # output (reduced in the wrapper) so the batch axis can be "parallel".
    # TODO(synk): at large D_IN/D_OUT, tile the weight over N and add a K
    # reduction grid axis; single-buffer the fixed-(0,0) resident inputs via
    # pipeline_mode=pl.Buffered(1) to save VMEM (v7x has only 64 MiB).


def lora_forward_loss(x, wT_bf, b2, aT_bf, bT_bf, labels):
    """Fused LoRA-linear + MSE-loss kernel. Returns the scalar loss."""
    loss = pl.pallas_call(
        lora_forward_loss_kernel,
        out_shape=jax.ShapeDtypeStruct((1, 1), jnp.float32),
        grid_spec=pltpu.PrefetchScalarGridSpec(
            num_scalar_prefetch=0,
            grid=(GRID_M,),
            in_specs=[
                pl.BlockSpec((TILE_M, D_IN), lambda i: (i, 0)),     # x (f32, cast in-kernel)
                pl.BlockSpec((D_IN, D_OUT), lambda i: (0, 0)),      # W^T bf16 (resident)
                pl.BlockSpec((1, D_OUT), lambda i: (0, 0)),         # bias (resident)
                pl.BlockSpec((D_IN, LORA_R), lambda i: (0, 0)),     # A^T bf16 (resident)
                pl.BlockSpec((LORA_R, D_OUT), lambda i: (0, 0)),    # B^T bf16 (resident)
                pl.BlockSpec((TILE_M, D_OUT), lambda i: (i, 0)),    # labels (f32)
            ],
            out_specs=pl.BlockSpec((1, 1), lambda i: (0, 0),
                                   memory_space=pltpu.MemorySpace.SMEM),
            scratch_shapes=[
                pltpu.VMEM((TILE_M, D_OUT), jnp.float32),           # loss accumulator
            ],
        ),
        # Scalar loss + accumulator are resident across the batch axis, so the
        # axis is a reduction axis -> "arbitrary".
        compiler_params=pltpu.CompilerParams(
            dimension_semantics=("arbitrary",)),
    )(x, wT_bf, b2, aT_bf, bT_bf, labels)
    return loss[0, 0]


# --------------------------- LoraTraining wrapper ---------------------------
class LoraTrainingPallas:
    """Mirrors LoraTraining.forward semantics for a tuple (data, labels) input."""

    def __init__(self, params, loss_scaling_factor=LOSS_SCALING_FACTOR):
        # Hoisted layout/dtype conversion: transpose + bf16 cast ONCE, so every
        # forward call issues plain row-major bf16 MXU matmuls.
        self.wT = jnp.transpose(params["weight"]).astype(jnp.bfloat16)   # (D_IN, D_OUT)
        self.aT = jnp.transpose(params["lora_a"]).astype(jnp.bfloat16)   # (D_IN, LORA_R)
        self.bT = jnp.transpose(params["lora_b"]).astype(jnp.bfloat16)   # (LORA_R, D_OUT)
        self.b2 = params["bias"].reshape(1, D_OUT).astype(jnp.float32)   # (1, D_OUT)
        self.loss_scaling_factor = loss_scaling_factor
        self.calibrate = False

    def set_loss_scaling_factor(self, f):
        self.loss_scaling_factor = f

    def toggle_calibrate(self, enable=True):
        self.calibrate = enable

    def forward(self, inputs):
        # process_inputs: tuple input -> attention_mask=None, labels=inputs[1]
        assert isinstance(inputs, tuple) and len(inputs) == 2
        x, labels = inputs
        attention_mask = None
        assert attention_mask is None  # tuple path never carries a mask

        loss = lora_forward_loss(x, self.wT, self.b2, self.aT, self.bT, labels)

        _scaled_loss = loss / self.loss_scaling_factor  # noqa: F841
        # TODO(synk): scaled_loss.backward() (LoRA gradient accumulation through
        # the CustomLinear backward approximation) has no forward-only Pallas
        # equivalent; the scaling applies to gradients, not the returned loss.

        return loss, None  # matches (loss.detach(), None)


# ---------------------------------- main ----------------------------------
if __name__ == "__main__":
    key = jax.random.PRNGKey(0)
    kx, kw, kb, ka, kbl, kl = jax.random.split(key, 6)

    # Deterministic synthetic parameters (shapes implied by a LoRA'd nn.Linear)
    params = {
        "weight": jax.random.normal(kw, (D_OUT, D_IN), jnp.float32) * 0.05,
        "bias":   jax.random.normal(kb, (D_OUT,), jnp.float32) * 0.01,
        "lora_a": jax.random.normal(ka, (LORA_R, D_IN), jnp.float32) * 0.05,
        "lora_b": jax.random.normal(kbl, (D_OUT, LORA_R), jnp.float32) * 0.05,
    }

    x = jax.random.normal(kx, (BATCH, D_IN), jnp.float32)
    labels = jax.random.normal(kl, (BATCH, D_OUT), jnp.float32)

    trainer = LoraTrainingPallas(params)
    loss_k, none_out = trainer.forward((x, labels))
    loss_k = jax.block_until_ready(loss_k)

    # ---- pure-JAX references ----
    def rt(a):  # bf16 round-trip, mirrors the kernel's operand casts
        return a.astype(jnp.bfloat16).astype(jnp.float32)

    # (a) reference mirroring the kernel's bf16 operands / f32 accumulation
    x_b = rt(x)
    base_ref = x_b @ rt(params["weight"].T)
    xa_ref = x_b @ rt(params["lora_a"].T)
    lora_ref = rt(xa_ref) @ rt(params["lora_b"].T)
    logits_ref = base_ref + LORA_SCALING * lora_ref + params["bias"][None, :]
    loss_ref = jnp.mean((logits_ref - labels) ** 2)

    # (b) full-precision f32 LoRA reference (looser tolerance, semantic check)
    logits_f32 = (
        x @ params["weight"].T
        + params["bias"]
        + LORA_SCALING * ((x @ params["lora_a"].T) @ params["lora_b"].T)
    )
    loss_f32 = jnp.mean((logits_f32 - labels) ** 2)

    assert none_out is None
    assert jnp.allclose(loss_k, loss_ref, rtol=2e-3, atol=2e-3), (
        float(loss_k), float(loss_ref))
    assert jnp.allclose(loss_k, loss_f32, rtol=5e-2, atol=5e-2), (
        float(loss_k), float(loss_f32))

    print("KERNEL_OK")
</pallas_src>

<mosaic_0001>
module attributes {stable_mosaic.version = 11 : i64} {
  func.func @lora_forward_loss_kernel(%arg0: i32, %arg1: memref<256x128xf32, #tpu.memory_space<vmem>>, %arg2: memref<128x128xbf16, #tpu.memory_space<vmem>>, %arg3: memref<1x128xf32, #tpu.memory_space<vmem>>, %arg4: memref<128x8xbf16, #tpu.memory_space<vmem>>, %arg5: memref<8x128xbf16, #tpu.memory_space<vmem>>, %arg6: memref<256x128xf32, #tpu.memory_space<vmem>>, %arg7: memref<1x1xf32, #tpu.memory_space<smem>>, %arg8: memref<256x128xf32, #tpu.memory_space<vmem>>) attributes {dimension_semantics = [#tpu.dimension_semantics<arbitrary>], iteration_bounds = array<i64: 1>, scalar_prefetch = 0 : i64, scratch_operands = 1 : i64, tpu.core_type = #tpu.core_type<tc>, window_params = [{transform_indices = @transform_0, window_bounds = array<i64: 256, 128>}, {pipeline_mode = #tpu.pipeline_mode<synchronous>, transform_indices = @transform_1, window_bounds = array<i64: 128, 128>}, {pipeline_mode = #tpu.pipeline_mode<synchronous>, transform_indices = @transform_2, window_bounds = array<i64: 1, 128>}, {pipeline_mode = #tpu.pipeline_mode<synchronous>, transform_indices = @transform_3, window_bounds = array<i64: 128, 8>}, {pipeline_mode = #tpu.pipeline_mode<synchronous>, transform_indices = @transform_4, window_bounds = array<i64: 8, 128>}, {transform_indices = @transform_5, window_bounds = array<i64: 256, 128>}, {transform_indices = @transform_6, window_bounds = array<i64: 1, 1>}]} {
    %c0_i32 = arith.constant 0 : i32
    %0 = arith.cmpi eq, %arg0, %c0_i32 : i32
    %1 = arith.extui %0 : i1 to i32
    %c0_i32_0 = arith.constant 0 : i32
    %2 = arith.cmpi ne, %1, %c0_i32_0 : i32
    scf.if %2 {
      %cst_21 = arith.constant 0.000000e+00 : f32
      %27 = vector.broadcast %cst_21 : f32 to vector<256x128xf32>
      %c0_22 = arith.constant 0 : index
      %c0_23 = arith.constant 0 : index
      %28 = vector.load %arg8[%c0_22, %c0_23] : memref<256x128xf32, #tpu.memory_space<vmem>>, vector<256x128xf32>
      tpu.vector_store %arg8[%c0_22, %c0_23], %27 {strides = array<i32>} : memref<256x128xf32, #tpu.memory_space<vmem>>, vector<256x128xf32>,
    } else {
    }
    %c0 = arith.constant 0 : index
    %c0_1 = arith.constant 0 : index
    %3 = vector.load %arg1[%c0, %c0_1] : memref<256x128xf32, #tpu.memory_space<vmem>>, vector<256x128xf32>
    %4 = arith.truncf %3 : vector<256x128xf32> to vector<256x128xbf16>
    %c0_2 = arith.constant 0 : index
    %c0_3 = arith.constant 0 : index
    %5 = vector.load %arg2[%c0_2, %c0_3] : memref<128x128xbf16, #tpu.memory_space<vmem>>, vector<128x128xbf16>
    %cst = arith.constant dense<0.000000e+00> : vector<256x128xf32>
    %6 = tpu.matmul %4, %5, %cst {dimension_numbers = #tpu.dot_dimension_numbers<[1], [0], [0], [1], [0, 0, 1, 1], [], []>} : vector<256x128xbf16>, vector<128x128xbf16>, vector<256x128xf32> -> vector<256x128xf32>
    %c0_4 = arith.constant 0 : index
    %c0_5 = arith.constant 0 : index
    %7 = vector.load %arg4[%c0_4, %c0_5] : memref<128x8xbf16, #tpu.memory_space<vmem>>, vector<128x8xbf16>
    %cst_6 = arith.constant dense<0.000000e+00> : vector<256x8xf32>
    %8 = tpu.matmul %4, %7, %cst_6 {dimension_numbers = #tpu.dot_dimension_numbers<[1], [0], [0], [1], [0, 0, 1, 1], [], []>} : vector<256x128xbf16>, vector<128x8xbf16>, vector<256x8xf32> -> vector<256x8xf32>
    %9 = arith.truncf %8 : vector<256x8xf32> to vector<256x8xbf16>
    %c0_7 = arith.constant 0 : index
    %c0_8 = arith.constant 0 : index
    %10 = vector.load %arg5[%c0_7, %c0_8] : memref<8x128xbf16, #tpu.memory_space<vmem>>, vector<8x128xbf16>
    %cst_9 = arith.constant dense<0.000000e+00> : vector<256x128xf32>
    %11 = tpu.matmul %9, %10, %cst_9 {dimension_numbers = #tpu.dot_dimension_numbers<[1], [0], [0], [1], [0, 0, 1, 1], [], []>} : vector<256x8xbf16>, vector<8x128xbf16>, vector<256x128xf32> -> vector<256x128xf32>
    %cst_10 = arith.constant 2.000000e+00 : f32
    %12 = vector.broadcast %cst_10 : f32 to vector<256x128xf32>
    %13 = arith.mulf %12, %11 : vector<256x128xf32>
    %14 = arith.addf %6, %13 : vector<256x128xf32>
    %c0_11 = arith.constant 0 : index
    %c0_12 = arith.constant 0 : index
    %15 = vector.load %arg3[%c0_11, %c0_12] : memref<1x128xf32, #tpu.memory_space<vmem>>, vector<1x128xf32>
    %16 = vector.broadcast %15 : vector<1x128xf32> to vector<256x128xf32>
    %17 = arith.addf %14, %16 : vector<256x128xf32>
    %c0_13 = arith.constant 0 : index
    %c0_14 = arith.constant 0 : index
    %18 = vector.load %arg6[%c0_13, %c0_14] : memref<256x128xf32, #tpu.memory_space<vmem>>, vector<256x128xf32>
    %19 = arith.subf %17, %18 : vector<256x128xf32>
    %c0_15 = arith.constant 0 : index
    %c0_16 = arith.constant 0 : index
    %20 = vector.load %arg8[%c0_15, %c0_16] : memref<256x128xf32, #tpu.memory_space<vmem>>, vector<256x128xf32>
    %21 = arith.mulf %19, %19 : vector<256x128xf32>
    %22 = arith.addf %20, %21 : vector<256x128xf32>
    %c0_17 = arith.constant 0 : index
    %c0_18 = arith.constant 0 : index
    %23 = vector.load %arg8[%c0_17, %c0_18] : memref<256x128xf32, #tpu.memory_space<vmem>>, vector<256x128xf32>
    tpu.vector_store %arg8[%c0_17, %c0_18], %22 {strides = array<i32>} : memref<256x128xf32, #tpu.memory_space<vmem>>, vector<256x128xf32>,
    %c0_i32_19 = arith.constant 0 : i32
    %24 = arith.cmpi eq, %arg0, %c0_i32_19 : i32
    %25 = arith.extui %24 : i1 to i32
    %c0_i32_20 = arith.constant 0 : i32
    %26 = arith.cmpi ne, %25, %c0_i32_20 : i32
    scf.if %26 {
      %c0_21 = arith.constant 0 : index
      %c0_22 = arith.constant 0 : index
      %27 = vector.load %arg8[%c0_21, %c0_22] : memref<256x128xf32, #tpu.memory_space<vmem>>, vector<256x128xf32>
      %28 = vector.shape_cast %27 : vector<256x128xf32> to vector<1x256x128xf32>
      %cst_23 = arith.constant dense<0.000000e+00> : vector<1xf32>
      %29 = vector.multi_reduction <add>, %28, %cst_23 [1, 2] : vector<1x256x128xf32> to vector<1xf32>
      %30 = vector.shape_cast %29 : vector<1xf32> to vector<1x1x1xf32>
      %31 = vector.extract %30[0, 0, 0] : f32 from vector<1x1x1xf32>
      %cst_24 = arith.constant 3.05175781E-5 : f32
      %32 = arith.mulf %31, %cst_24 : f32
      %c0_25 = arith.constant 0 : index
      %c0_26 = arith.constant 0 : index
      %33 = memref.load %arg7[%c0_25, %c0_26] : memref<1x1xf32, #tpu.memory_space<smem>>
      memref.store %32, %arg7[%c0_25, %c0_26] : memref<1x1xf32, #tpu.memory_space<smem>>
    } else {
    }
    return
  }
  func.func @transform_0(%arg0: i32) -> (i32, i32) {
    %c0_i32 = arith.constant 0 : i32
    %c0_i32_0 = arith.constant 0 : i32
    return %arg0, %c0_i32 : i32, i32
  }
  func.func @transform_1(%arg0: i32) -> (i32, i32) {
    %c0_i32 = arith.constant 0 : i32
    %c0_i32_0 = arith.constant 0 : i32
    %c0_i32_1 = arith.constant 0 : i32
    return %c0_i32, %c0_i32_0 : i32, i32
  }
  func.func @transform_2(%arg0: i32) -> (i32, i32) {
    %c0_i32 = arith.constant 0 : i32
    %c0_i32_0 = arith.constant 0 : i32
    %c0_i32_1 = arith.constant 0 : i32
    return %c0_i32, %c0_i32_0 : i32, i32
  }
  func.func @transform_3(%arg0: i32) -> (i32, i32) {
    %c0_i32 = arith.constant 0 : i32
    %c0_i32_0 = arith.constant 0 : i32
    %c0_i32_1 = arith.constant 0 : i32
    return %c0_i32, %c0_i32_0 : i32, i32
  }
  func.func @transform_4(%arg0: i32) -> (i32, i32) {
    %c0_i32 = arith.constant 0 : i32
    %c0_i32_0 = arith.constant 0 : i32
    %c0_i32_1 = arith.constant 0 : i32
    return %c0_i32, %c0_i32_0 : i32, i32
  }
  func.func @transform_5(%arg0: i32) -> (i32, i32) {
    %c0_i32 = arith.constant 0 : i32
    %c0_i32_0 = arith.constant 0 : i32
    return %arg0, %c0_i32 : i32, i32
  }
  func.func @transform_6(%arg0: i32) -> (i32, i32) {
    %c0_i32 = arith.constant 0 : i32
    %c0_i32_0 = arith.constant 0 : i32
    %c0_i32_1 = arith.constant 0 : i32
    return %c0_i32, %c0_i32_0 : i32, i32
  }
}

</mosaic_0001>

<llo_original>
// kernel: tpu_custom_call.1
$region0: #{tpu_custom_call.1}
  #allocation0 [shape = 'u32[]', space=smem, size = 0x4, offset = 0x4, fixed_abs, tag = 'smem constant byte address 0x4 - core index']
  #allocation1 [shape = 'u32[144,128]{1,0:T(1,128)}', space=vmem, size = 0x12000, scoped, tag = 'internal scratch']
  #allocation2 [shape = 'f32[256,128]{1,0:T(8,128)}', space=vmem, size = 0x20000, scoped, tag = 'scratch operand']
  %s0 = inlined_call_operand.hbm [shape: f32[256,128], index: 0, kind: input, shape index: {}]
  %s1 = inlined_call_operand.vmem [shape: bf16[128,128], index: 1, kind: input, shape index: {}]
  %s2 = inlined_call_operand.vmem [shape: f32[1,128], index: 2, kind: input, shape index: {}]
  %s3 = inlined_call_operand.vmem [shape: bf16[128,8], index: 3, kind: input, shape index: {}]
  %s4 = inlined_call_operand.vmem [shape: bf16[8,128], index: 4, kind: input, shape index: {}]
  %s5 = inlined_call_operand.hbm [shape: f32[256,128], index: 5, kind: input, shape index: {}]
  %s6 = inlined_call_operand.hbm [shape: f32[1,1], index: 6, kind: output, shape index: {}]
  %s7 = sld [smem:[#allocation0]]
  $region50: #{tpu_custom_call.1} parent=0
    _
  %s9 = ssub.s32 1, %s7
  %s10 = scalar_select 0, %s9, %s7
  $region1: #{tpu_custom_call.1} parent=0
    #allocation3 [shape = 'u8[131072]{0}', space=vmem, size = 0x20000, scoped, tag = 'input window, operand 0, single buffered']
    #allocation4 [shape = 's32[1]{0}', space=sflag, size = 0x4, scoped, tag = 'scoped memory for tpu_custom_call.1']
    #allocation5 [shape = 's32[1]{0}', space=sflag, size = 0x4, scoped, tag = 'scoped memory for tpu_custom_call.1']
    #allocation6 [shape = 'u8[131072]{0}', space=vmem, size = 0x20000, scoped, tag = 'input window, operand 5, single buffered']
    #allocation7 [shape = 's32[1]{0}', space=sflag, size = 0x4, scoped, tag = 'scoped memory for tpu_custom_call.1']
    #allocation8 [shape = 'u8[512]{0}', space=smem, size = 0x200, scoped, tag = 'output window, operand 0, single buffered']
    %11 = vsyncpa [#allocation4], 0
    %12 = vsyncpa [#allocation7], 0
    %13 = vsyncpa [#allocation5], 0
    // Predicated region
    $region2: #{tpu_custom_call.1} parent=1 // pred_check
      _
    $region3: #{tpu_custom_call.1} parent=1 // pred_check_branch
      %15 = sbr.rel (0) target = $region5
    $region4: #{tpu_custom_call.1} parent=1 // pred_region
      %s17 = ssub.s32 4096, 4096
      %18 = vsyncadd [#allocation4], %s17
      %s19 = sshll.u32 [#allocation3], 4
      %s20 = int_to_ptr.vmem [resolvable:$true] %s19
      %25 = dma.hbm_to_vmem [thread:$0]  %s0, 4096, %s20, [#allocation4], 128, 128, 8
    $region5: #{tpu_custom_call.1} parent=1 // pred_fallthru
      _
    // Predicated region
    $region6: #{tpu_custom_call.1} parent=1 // pred_check
      _
    $region7: #{tpu_custom_call.1} parent=1 // pred_check_branch
      %27 = sbr.rel (0) target = $region9
    $region8: #{tpu_custom_call.1} parent=1 // pred_region
      _
    $region9: #{tpu_custom_call.1} parent=1 // pred_fallthru
      _
    // Predicated region
    $region10: #{tpu_custom_call.1} parent=1 // pred_check
      _
    $region11: #{tpu_custom_call.1} parent=1 // pred_check_branch
      %29 = sbr.rel (0) target = $region13
    $region12: #{tpu_custom_call.1} parent=1 // pred_region
      _
    $region13: #{tpu_custom_call.1} parent=1 // pred_fallthru
      _
    // Predicated region
    $region14: #{tpu_custom_call.1} parent=1 // pred_check
      _
    $region15: #{tpu_custom_call.1} parent=1 // pred_check_branch
      %31 = sbr.rel (0) target = $region17
    $region16: #{tpu_custom_call.1} parent=1 // pred_region
      _
    $region17: #{tpu_custom_call.1} parent=1 // pred_fallthru
      _
    // Predicated region
    $region18: #{tpu_custom_call.1} parent=1 // pred_check
      _
    $region19: #{tpu_custom_call.1} parent=1 // pred_check_branch
      %33 = sbr.rel (0) target = $region21
    $region20: #{tpu_custom_call.1} parent=1 // pred_region
      _
    $region21: #{tpu_custom_call.1} parent=1 // pred_fallthru
      _
    // Predicated region
    $region22: #{tpu_custom_call.1} parent=1 // pred_check
      _
    $region23: #{tpu_custom_call.1} parent=1 // pred_check_branch
      %35 = sbr.rel (0) target = $region25
    $region24: #{tpu_custom_call.1} parent=1 // pred_region
      %s37 = ssub.s32 4096, 4096
      %38 = vsyncadd [#allocation7], %s37
      %s39 = sshll.u32 [#allocation6], 4
      %s40 = int_to_ptr.vmem [resolvable:$true] %s39
      %45 = dma.hbm_to_vmem [thread:$0]  %s5, 4096, %s40, [#allocation7], 128, 128, 8
    $region25: #{tpu_custom_call.1} parent=1 // pred_fallthru
      _
    // Predicated region
    $region26: #{tpu_custom_call.1} parent=1 // pred_check
      _
    $region27: #{tpu_custom_call.1} parent=1 // pred_check_branch
      %47 = sbr.rel (0) target = $region29
    $region28: #{tpu_custom_call.1} parent=1 // pred_region
      %48 = dma.done [#allocation4], 4096
    $region29: #{tpu_custom_call.1} parent=1 // pred_fallthru
      _
    // Predicated region
    $region30: #{tpu_custom_call.1} parent=1 // pred_check
      _
    $region31: #{tpu_custom_call.1} parent=1 // pred_check_branch
      %50 = sbr.rel (0) target = $region33
    $region32: #{tpu_custom_call.1} parent=1 // pred_region
      %51 = dma.done [#allocation7], 4096
    $region33: #{tpu_custom_call.1} parent=1 // pred_fallthru
      _
    %p53 = scmp.eq.s32.totalorder 0, 0
    // Predicated region
    $region34: #{tpu_custom_call.1} parent=1 // pred_check
      %p54 = pneg %p53
    $region35: #{tpu_custom_call.1} parent=1 // pred_check_branch
      %56 = sbr.rel (%p54) target = $region37
    $region36: #{tpu_custom_call.1} parent=1 // pred_region
      %57 = vst [vmem:[#allocation2] sm:$0xff] 0.0
      %58 = vst [vmem:[#allocation2 + $0x8] sm:$0xff] 0.0
      %59 = vst [vmem:[#allocation2 + $0x10] sm:$0xff] 0.0
      %60 = vst [vmem:[#allocation2 + $0x18] sm:$0xff] 0.0
      %61 = vst [vmem:[#allocation2 + $0x20] sm:$0xff] 0.0
      %62 = vst [vmem:[#allocation2 + $0x28] sm:$0xff] 0.0
      %63 = vst [vmem:[#allocation2 + $0x30] sm:$0xff] 0.0
      %64 = vst [vmem:[#allocation2 + $0x38] sm:$0xff] 0.0
      %65 = vst [vmem:[#allocation2 + $0x40] sm:$0xff] 0.0
      %66 = vst [vmem:[#allocation2 + $0x48] sm:$0xff] 0.0
      %67 = vst [vmem:[#allocation2 + $0x50] sm:$0xff] 0.0
      %68 = vst [vmem:[#allocation2 + $0x58] sm:$0xff] 0.0
      %69 = vst [vmem:[#allocation2 + $0x60] sm:$0xff] 0.0
      %70 = vst [vmem:[#allocation2 + $0x68] sm:$0xff] 0.0
      %71 = vst [vmem:[#allocation2 + $0x70] sm:$0xff] 0.0
      %72 = vst [vmem:[#allocation2 + $0x78] sm:$0xff] 0.0
      %73 = vst [vmem:[#allocation2 + $0x80] sm:$0xff] 0.0
      %74 = vst [vmem:[#allocation2 + $0x88] sm:$0xff] 0.0
      %75 = vst [vmem:[#allocation2 + $0x90] sm:$0xff] 0.0
      %76 = vst [vmem:[#allocation2 + $0x98] sm:$0xff] 0.0
      %77 = vst [vmem:[#allocation2 + $0xa0] sm:$0xff] 0.0
      %78 = vst [vmem:[#allocation2 + $0xa8] sm:$0xff] 0.0
      %79 = vst [vmem:[#allocation2 + $0xb0] sm:$0xff] 0.0
      %80 = vst [vmem:[#allocation2 + $0xb8] sm:$0xff] 0.0
      %81 = vst [vmem:[#allocation2 + $0xc0] sm:$0xff] 0.0
      %82 = vst [vmem:[#allocation2 + $0xc8] sm:$0xff] 0.0
      %83 = vst [vmem:[#allocation2 + $0xd0] sm:$0xff] 0.0
      %84 = vst [vmem:[#allocation2 + $0xd8] sm:$0xff] 0.0
      %85 = vst [vmem:[#allocation2 + $0xe0] sm:$0xff] 0.0
      %86 = vst [vmem:[#allocation2 + $0xe8] sm:$0xff] 0.0
      %87 = vst [vmem:[#allocation2 + $0xf0] sm:$0xff] 0.0
      %88 = vst [vmem:[#allocation2 + $0xf8] sm:$0xff] 0.0
    $region37: #{tpu_custom_call.1} parent=1 // pred_fallthru
      _
    %v89 = vld [vmem:[#allocation3] sm:$0xff]
    %v90 = vld [vmem:[#allocation3 + $0x8] sm:$0xff]
    %v91 = vld [vmem:[#allocation3 + $0x10] sm:$0xff]
    %v92 = vld [vmem:[#allocation3 + $0x18] sm:$0xff]
    %v93 = vld [vmem:[#allocation3 + $0x20] sm:$0xff]
    %v94 = vld [vmem:[#allocation3 + $0x28] sm:$0xff]
    %v95 = vld [vmem:[#allocation3 + $0x30] sm:$0xff]
    %v96 = vld [vmem:[#allocation3 + $0x38] sm:$0xff]
    %v97 = vld [vmem:[#allocation3 + $0x40] sm:$0xff]
    %v98 = vld [vmem:[#allocation3 + $0x48] sm:$0xff]
    %v99 = vld [vmem:[#allocation3 + $0x50] sm:$0xff]
    %v100 = vld [vmem:[#allocation3 + $0x58] sm:$0xff]
    %v101 = vld [vmem:[#allocation3 + $0x60] sm:$0xff]
    %v102 = vld [vmem:[#allocation3 + $0x68] sm:$0xff]
    %v103 = vld [vmem:[#allocation3 + $0x70] sm:$0xff]
    %v104 = vld [vmem:[#allocation3 + $0x78] sm:$0xff]
    %v105 = vld [vmem:[#allocation3 + $0x80] sm:$0xff]
    %v106 = vld [vmem:[#allocation3 + $0x88] sm:$0xff]
    %v107 = vld [vmem:[#allocation3 + $0x90] sm:$0xff]
    %v108 = vld [vmem:[#allocation3 + $0x98] sm:$0xff]
    %v109 = vld [vmem:[#allocation3 + $0xa0] sm:$0xff]
    %v110 = vld [vmem:[#allocation3 + $0xa8] sm:$0xff]
    %v111 = vld [vmem:[#allocation3 + $0xb0] sm:$0xff]
    %v112 = vld [vmem:[#allocation3 + $0xb8] sm:$0xff]
    %v113 = vld [vmem:[#allocation3 + $0xc0] sm:$0xff]
    %v114 = vld [vmem:[#allocation3 + $0xc8] sm:$0xff]
    %v115 = vld [vmem:[#allocation3 + $0xd0] sm:$0xff]
    %v116 = vld [vmem:[#allocation3 + $0xd8] sm:$0xff]
    %v117 = vld [vmem:[#allocation3 + $0xe0] sm:$0xff]
    %v118 = vld [vmem:[#allocation3 + $0xe8] sm:$0xff]
    %v119 = vld [vmem:[#allocation3 + $0xf0] sm:$0xff]
    %v120 = vld [vmem:[#allocation3 + $0xf8] sm:$0xff]
    %v121 = vpack.c.bf16 %v90, %v89
    %v122 = vpack.c.bf16 %v92, %v91
    %v123 = vpack.c.bf16 %v94, %v93
    %v124 = vpack.c.bf16 %v96, %v95
    %v125 = vpack.c.bf16 %v98, %v97
    %v126 = vpack.c.bf16 %v100, %v99
    %v127 = vpack.c.bf16 %v102, %v101
    %v128 = vpack.c.bf16 %v104, %v103
    %v129 = vpack.c.bf16 %v106, %v105
    %v130 = vpack.c.bf16 %v108, %v107
    %v131 = vpack.c.bf16 %v110, %v109
    %v132 = vpack.c.bf16 %v112, %v111
    %v133 = vpack.c.bf16 %v114, %v113
    %v134 = vpack.c.bf16 %v116, %v115
    %v135 = vpack.c.bf16 %v118, %v117
    %v136 = vpack.c.bf16 %v120, %v119
    %v137 = vld [vmem:[%s1] sm:$0xf]
    %v138 = vld [vmem:[%s1 + $0x4] sm:$0xf]
    %v139 = vld [vmem:[%s1 + $0x8] sm:$0xf]
    %v140 = vld [vmem:[%s1 + $0xc] sm:$0xf]
    %v141 = vld [vmem:[%s1 + $0x10] sm:$0xf]
    %v142 = vld [vmem:[%s1 + $0x14] sm:$0xf]
    %v143 = vld [vmem:[%s1 + $0x18] sm:$0xf]
    %v144 = vld [vmem:[%s1 + $0x1c] sm:$0xf]
    %v145 = vld [vmem:[%s1 + $0x20] sm:$0xf]
    %v146 = vld [vmem:[%s1 + $0x24] sm:$0xf]
    %v147 = vld [vmem:[%s1 + $0x28] sm:$0xf]
    %v148 = vld [vmem:[%s1 + $0x2c] sm:$0xf]
    %v149 = vld [vmem:[%s1 + $0x30] sm:$0xf]
    %v150 = vld [vmem:[%s1 + $0x34] sm:$0xf]
    %v151 = vld [vmem:[%s1 + $0x38] sm:$0xf]
    %v152 = vld [vmem:[%s1 + $0x3c] sm:$0xf]
    %v153 = vld [vmem:[%s3] sm:$0xf]
    %v154 = vld [vmem:[%s3 + $0x4] sm:$0xf]
    %v155 = vld [vmem:[%s3 + $0x8] sm:$0xf]
    %v156 = vld [vmem:[%s3 + $0xc] sm:$0xf]
    %v157 = vld [vmem:[%s3 + $0x10] sm:$0xf]
    %v158 = vld [vmem:[%s3 + $0x14] sm:$0xf]
    %v159 = vld [vmem:[%s3 + $0x18] sm:$0xf]
    %v160 = vld [vmem:[%s3 + $0x1c] sm:$0xf]
    %v161 = vld [vmem:[%s3 + $0x20] sm:$0xf]
    %v162 = vld [vmem:[%s3 + $0x24] sm:$0xf]
    %v163 = vld [vmem:[%s3 + $0x28] sm:$0xf]
    %v164 = vld [vmem:[%s3 + $0x2c] sm:$0xf]
    %v165 = vld [vmem:[%s3 + $0x30] sm:$0xf]
    %v166 = vld [vmem:[%s3 + $0x34] sm:$0xf]
    %v167 = vld [vmem:[%s3 + $0x38] sm:$0xf]
    %v168 = vld [vmem:[%s3 + $0x3c] sm:$0xf]
    %v185 = vunpack.c.l.b16 %v153
    %v186 = vunpack.c.l.b16 %v154
    %v187 = vunpack.c.l.b16 %v155
    %v188 = vunpack.c.l.b16 %v156
    %v189 = vunpack.c.l.b16 %v157
    %v190 = vunpack.c.l.b16 %v158
    %v191 = vunpack.c.l.b16 %v159
    %v192 = vunpack.c.l.b16 %v160
    %v193 = vunpack.c.l.b16 %v161
    %v194 = vunpack.c.l.b16 %v162
    %v195 = vunpack.c.l.b16 %v163
    %v196 = vunpack.c.l.b16 %v164
    %v197 = vunpack.c.l.b16 %v165
    %v198 = vunpack.c.l.b16 %v166
    %v199 = vunpack.c.l.b16 %v167
    %v200 = vunpack.c.l.b16 %v168
    %v201 = vpack.c.b16 %v186, %v185
    %v202 = vpack.c.b16 %v188, %v187
    %v203 = vpack.c.b16 %v190, %v189
    %v204 = vpack.c.b16 %v192, %v191
    %v205 = vpack.c.b16 %v194, %v193
    %v206 = vpack.c.b16 %v196, %v195
    %v207 = vpack.c.b16 %v198, %v197
    %v208 = vpack.c.b16 %v200, %v199
    %217 = vmatprep.subr.bf16.mxu0 0
    %218 = vmatpush1.bf16.msra.mxu0 %v201
    %219 = vmatprep.subr.bf16.mxu0 0
    %220 = vmatpush1.bf16.msra.mxu0 %v202
    %221 = vmatprep.subr.bf16.mxu0 0
    %222 = vmatpush1.bf16.msra.mxu0 %v203
    %223 = vmatprep.subr.bf16.mxu0 0
    %224 = vmatpush1.bf16.msra.mxu0 %v204
    %225 = vmatprep.subr.bf16.mxu0 0
    %226 = vmatpush1.bf16.msra.mxu0 %v205
    %227 = vmatprep.subr.bf16.mxu0 0
    %228 = vmatpush1.bf16.msra.mxu0 %v206
    %229 = vmatprep.subr.bf16.mxu0 0
    %230 = vmatpush1.bf16.msra.mxu0 %v207
    %231 = vmatprep.subr.bf16.mxu0 0
    %232 = vmatpush1.bf16.msra.mxu0 %v208
    %233 = vmatprep.subr.bf16.mxu0 0
    %234 = vmatpush1.bf16.msra.mxu0 0
    %235 = vmatprep.subr.bf16.mxu0 0
    %236 = vmatpush1.bf16.msra.mxu0 0
    %237 = vmatprep.subr.bf16.mxu0 0
    %238 = vmatpush1.bf16.msra.mxu0 0
    %239 = vmatprep.subr.bf16.mxu0 0
    %240 = vmatpush1.bf16.msra.mxu0 0
    %241 = vmatprep.subr.bf16.mxu0 0
    %242 = vmatpush1.bf16.msra.mxu0 0
    %243 = vmatprep.subr.bf16.mxu0 0
    %244 = vmatpush1.bf16.msra.mxu0 0
    %245 = vmatprep.subr.bf16.mxu0 0
    %246 = vmatpush1.bf16.msra.mxu0 0
    %247 = vmatprep.subr.bf16.mxu0 0
    %248 = vmatpush1.bf16.msra.mxu0 0
    %249 = vmatprep.mubr.bf16.mxu0 0
    %250 = vmatmul.mubr.bf16.gmra.mrb[0].mxu0 %v121
    %v251 = vpop.f32.mrb[0].mxu0
    %v252 = vadd.f32 0.0, %v251
    %v253 = vpop.f32.mrb[0].mxu0
    %v254 = vpop.f32.mrb[0].mxu0
    %v255 = vadd.f32 0.0, %v254
    %v256 = vpop.f32.mrb[0].mxu0
    %257 = vmatprep.mubr.bf16.mxu0 0
    %258 = vmatmul.mubr.bf16.gmra.mrb[0].mxu0 %v122
    %v259 = vpop.f32.mrb[0].mxu0
    %v260 = vadd.f32 0.0, %v259
    %v261 = vpop.f32.mrb[0].mxu0
    %v262 = vpop.f32.mrb[0].mxu0
    %v263 = vadd.f32 0.0, %v262
    %v264 = vpop.f32.mrb[0].mxu0
    %265 = vmatprep.mubr.bf16.mxu0 0
    %266 = vmatmul.mubr.bf16.gmra.mrb[0].mxu0 %v123
    %v267 = vpop.f32.mrb[0].mxu0
    %v268 = vadd.f32 0.0, %v267
    %v269 = vpop.f32.mrb[0].mxu0
    %v270 = vpop.f32.mrb[0].mxu0
    %v271 = vadd.f32 0.0, %v270
    %v272 = vpop.f32.mrb[0].mxu0
    %273 = vmatprep.mubr.bf16.mxu0 0
    %274 = vmatmul.mubr.bf16.gmra.mrb[0].mxu0 %v124
    %v275 = vpop.f32.mrb[0].mxu0
    %v276 = vadd.f32 0.0, %v275
    %v277 = vpop.f32.mrb[0].mxu0
    %v278 = vpop.f32.mrb[0].mxu0
    %v279 = vadd.f32 0.0, %v278
    %v280 = vpop.f32.mrb[0].mxu0
    %281 = vmatprep.mubr.bf16.mxu0 0
    %282 = vmatmul.mubr.bf16.gmra.mrb[0].mxu0 %v125
    %v283 = vpop.f32.mrb[0].mxu0
    %v284 = vadd.f32 0.0, %v283
    %v285 = vpop.f32.mrb[0].mxu0
    %v286 = vpop.f32.mrb[0].mxu0
    %v287 = vadd.f32 0.0, %v286
    %v288 = vpop.f32.mrb[0].mxu0
    %289 = vmatprep.mubr.bf16.mxu0 0
    %290 = vmatmul.mubr.bf16.gmra.mrb[0].mxu0 %v126
    %v291 = vpop.f32.mrb[0].mxu0
    %v292 = vadd.f32 0.0, %v291
    %v293 = vpop.f32.mrb[0].mxu0
    %v294 = vpop.f32.mrb[0].mxu0
    %v295 = vadd.f32 0.0, %v294
    %v296 = vpop.f32.mrb[0].mxu0
    %297 = vmatprep.mubr.bf16.mxu0 0
    %298 = vmatmul.mubr.bf16.gmra.mrb[0].mxu0 %v127
    %v299 = vpop.f32.mrb[0].mxu0
    %v300 = vadd.f32 0.0, %v299
    %v301 = vpop.f32.mrb[0].mxu0
    %v302 = vpop.f32.mrb[0].mxu0
    %v303 = vadd.f32 0.0, %v302
    %v304 = vpop.f32.mrb[0].mxu0
    %305 = vmatprep.mubr.bf16.mxu0 0
    %306 = vmatmul.mubr.bf16.gmra.mrb[0].mxu0 %v128
    %v307 = vpop.f32.mrb[0].mxu0
    %v308 = vadd.f32 0.0, %v307
    %v309 = vpop.f32.mrb[0].mxu0
    %v310 = vpop.f32.mrb[0].mxu0
    %v311 = vadd.f32 0.0, %v310
    %v312 = vpop.f32.mrb[0].mxu0
    %313 = vmatprep.mubr.bf16.mxu0 0
    %314 = vmatmul.mubr.bf16.gmra.mrb[0].mxu0 %v129
    %v315 = vpop.f32.mrb[0].mxu0
    %v316 = vadd.f32 0.0, %v315
    %v317 = vpop.f32.mrb[0].mxu0
    %v318 = vpop.f32.mrb[0].mxu0
    %v319 = vadd.f32 0.0, %v318
    %v320 = vpop.f32.mrb[0].mxu0
    %321 = vmatprep.mubr.bf16.mxu0 0
    %322 = vmatmul.mubr.bf16.gmra.mrb[0].mxu0 %v130
    %v323 = vpop.f32.mrb[0].mxu0
    %v324 = vadd.f32 0.0, %v323
    %v325 = vpop.f32.mrb[0].mxu0
    %v326 = vpop.f32.mrb[0].mxu0
    %v327 = vadd.f32 0.0, %v326
    %v328 = vpop.f32.mrb[0].mxu0
    %329 = vmatprep.mubr.bf16.mxu0 0
    %330 = vmatmul.mubr.bf16.gmra.mrb[0].mxu0 %v131
    %v331 = vpop.f32.mrb[0].mxu0
    %v332 = vadd.f32 0.0, %v331
    %v333 = vpop.f32.mrb[0].mxu0
    %v334 = vpop.f32.mrb[0].mxu0
    %v335 = vadd.f32 0.0, %v334
    %v336 = vpop.f32.mrb[0].mxu0
    %337 = vmatprep.mubr.bf16.mxu0 0
    %338 = vmatmul.mubr.bf16.gmra.mrb[0].mxu0 %v132
    %v339 = vpop.f32.mrb[0].mxu0
    %v340 = vadd.f32 0.0, %v339
    %v341 = vpop.f32.mrb[0].mxu0
    %v342 = vpop.f32.mrb[0].mxu0
    %v343 = vadd.f32 0.0, %v342
    %v344 = vpop.f32.mrb[0].mxu0
    %345 = vmatprep.mubr.bf16.mxu0 0
    %346 = vmatmul.mubr.bf16.gmra.mrb[0].mxu0 %v133
    %v347 = vpop.f32.mrb[0].mxu0
    %v348 = vadd.f32 0.0, %v347
    %v349 = vpop.f32.mrb[0].mxu0
    %v350 = vpop.f32.mrb[0].mxu0
    %v351 = vadd.f32 0.0, %v350
    %v352 = vpop.f32.mrb[0].mxu0
    %353 = vmatprep.mubr.bf16.mxu0 0
    %354 = vmatmul.mubr.bf16.gmra.mrb[0].mxu0 %v134
    %v355 = vpop.f32.mrb[0].mxu0
    %v356 = vadd.f32 0.0, %v355
    %v357 = vpop.f32.mrb[0].mxu0
    %v358 = vpop.f32.mrb[0].mxu0
    %v359 = vadd.f32 0.0, %v358
    %v360 = vpop.f32.mrb[0].mxu0
    %361 = vmatprep.mubr.bf16.mxu0 0
    %362 = vmatmul.mubr.bf16.gmra.mrb[0].mxu0 %v135
    %v363 = vpop.f32.mrb[0].mxu0
    %v364 = vadd.f32 0.0, %v363
    %v365 = vpop.f32.mrb[0].mxu0
    %v366 = vpop.f32.mrb[0].mxu0
    %v367 = vadd.f32 0.0, %v366
    %v368 = vpop.f32.mrb[0].mxu0
    %369 = vmatprep.mubr.bf16.mxu0 0
    %370 = vmatmul.mubr.bf16.gmra.mrb[0].mxu0 %v136
    %v371 = vpop.f32.mrb[0].mxu0
    %v372 = vadd.f32 0.0, %v371
    %v373 = vpop.f32.mrb[0].mxu0
    %v374 = vpop.f32.mrb[0].mxu0
    %v375 = vadd.f32 0.0, %v374
    %v376 = vpop.f32.mrb[0].mxu0
    %377 = vdwg.mxu0
    %v378 = vpack.c.bf16 %v255, %v252
    %v379 = vpack.c.bf16 %v263, %v260
    %v380 = vpack.c.bf16 %v271, %v268
    %v381 = vpack.c.bf16 %v279, %v276
    %v382 = vpack.c.bf16 %v287, %v284
    %v383 = vpack.c.bf16 %v295, %v292
    %v384 = vpack.c.bf16 %v303, %v300
    %v385 = vpack.c.bf16 %v311, %v308
    %v386 = vpack.c.bf16 %v319, %v316
    %v387 = vpack.c.bf16 %v327, %v324
    %v388 = vpack.c.bf16 %v335, %v332
    %v389 = vpack.c.bf16 %v343, %v340
    %v390 = vpack.c.bf16 %v351, %v348
    %v391 = vpack.c.bf16 %v359, %v356
    %v392 = vpack.c.bf16 %v367, %v364
    %v393 = vpack.c.bf16 %v375, %v372
    %v394 = vld [vmem:[%s4] sm:$0xf]
    %vm395 = vcmask 64512
    %v397 = vsel %vm395, %v378, 0
    %v400 = vsel %vm395, %v379, 0
    %v403 = vsel %vm395, %v380, 0
    %v406 = vsel %vm395, %v381, 0
    %v409 = vsel %vm395, %v382, 0
    %v412 = vsel %vm395, %v383, 0
    %v415 = vsel %vm395, %v384, 0
    %v418 = vsel %vm395, %v385, 0
    %v421 = vsel %vm395, %v386, 0
    %v424 = vsel %vm395, %v387, 0
    %v427 = vsel %vm395, %v388, 0
    %v430 = vsel %vm395, %v389, 0
    %v433 = vsel %vm395, %v390, 0
    %v436 = vsel %vm395, %v391, 0
    %v439 = vsel %vm395, %v392, 0
    %v442 = vsel %vm395, %v393, 0
    %vm444 = vcmask 1043456
    %v446 = vsel %vm444, %v394, 0
    %448 = vmatprep.subr.bf16.mxu0 0
    %449 = vmatpush1.bf16.msra.mxu0 %v446
    %450 = vmatprep.subr.bf16.mxu0 0
    %451 = vmatpush1.bf16.msra.mxu0 0
    %452 = vmatprep.subr.bf16.mxu0 0
    %453 = vmatpush1.bf16.msra.mxu0 0
    %454 = vmatprep.subr.bf16.mxu0 0
    %455 = vmatpush1.bf16.msra.mxu0 0
    %456 = vmatprep.subr.bf16.mxu0 0
    %457 = vmatpush1.bf16.msra.mxu0 0
    %458 = vmatprep.subr.bf16.mxu0 0
    %459 = vmatpush1.bf16.msra.mxu0 0
    %460 = vmatprep.subr.bf16.mxu0 0
    %461 = vmatpush1.bf16.msra.mxu0 0
    %462 = vmatprep.subr.bf16.mxu0 0
    %463 = vmatpush1.bf16.msra.mxu0 0
    %464 = vmatprep.subr.bf16.mxu0 0
    %465 = vmatpush1.bf16.msra.mxu0 0
    %466 = vmatprep.subr.bf16.mxu0 0
    %467 = vmatpush1.bf16.msra.mxu0 0
    %468 = vmatprep.subr.bf16.mxu0 0
    %469 = vmatpush1.bf16.msra.mxu0 0
    %470 = vmatprep.subr.bf16.mxu0 0
    %471 = vmatpush1.bf16.msra.mxu0 0
    %472 = vmatprep.subr.bf16.mxu0 0
    %473 = vmatpush1.bf16.msra.mxu0 0
    %474 = vmatprep.subr.bf16.mxu0 0
    %475 = vmatpush1.bf16.msra.mxu0 0
    %476 = vmatprep.subr.bf16.mxu0 0
    %477 = vmatpush1.bf16.msra.mxu0 0
    %478 = vmatprep.subr.bf16.mxu0 0
    %479 = vmatpush1.bf16.msra.mxu0 0
    %480 = vmatprep.mubr.bf16.mxu0 0
    %481 = vmatmul.mubr.bf16.gmra.mrb[0].mxu0 %v397
    %v482 = vpop.f32.mrb[0].mxu0
    %v483 = vadd.f32 0.0, %v482
    %v484 = vpop.f32.mrb[0].mxu0
    %v485 = vpop.f32.mrb[0].mxu0
    %v486 = vadd.f32 0.0, %v485
    %v487 = vpop.f32.mrb[0].mxu0
    %488 = vmatprep.mubr.bf16.mxu0 0
    %489 = vmatmul.mubr.bf16.gmra.mrb[0].mxu0 %v400
    %v490 = vpop.f32.mrb[0].mxu0
    %v491 = vadd.f32 0.0, %v490
    %v492 = vpop.f32.mrb[0].mxu0
    %v493 = vpop.f32.mrb[0].mxu0
    %v494 = vadd.f32 0.0, %v493
    %v495 = vpop.f32.mrb[0].mxu0
    %496 = vmatprep.mubr.bf16.mxu0 0
    %497 = vmatmul.mubr.bf16.gmra.mrb[0].mxu0 %v403
    %v498 = vpop.f32.mrb[0].mxu0
    %v499 = vadd.f32 0.0, %v498
    %v500 = vpop.f32.mrb[0].mxu0
    %v501 = vpop.f32.mrb[0].mxu0
    %v502 = vadd.f32 0.0, %v501
    %v503 = vpop.f32.mrb[0].mxu0
    %504 = vmatprep.mubr.bf16.mxu0 0
    %505 = vmatmul.mubr.bf16.gmra.mrb[0].mxu0 %v406
    %v506 = vpop.f32.mrb[0].mxu0
    %v507 = vadd.f32 0.0, %v506
    %v508 = vpop.f32.mrb[0].mxu0
    %v509 = vpop.f32.mrb[0].mxu0
    %v510 = vadd.f32 0.0, %v509
    %v511 = vpop.f32.mrb[0].mxu0
    %512 = vmatprep.mubr.bf16.mxu0 0
    %513 = vmatmul.mubr.bf16.gmra.mrb[0].mxu0 %v409
    %v514 = vpop.f32.mrb[0].mxu0
    %v515 = vadd.f32 0.0, %v514
    %v516 = vpop.f32.mrb[0].mxu0
    %v517 = vpop.f32.mrb[0].mxu0
    %v518 = vadd.f32 0.0, %v517
    %v519 = vpop.f32.mrb[0].mxu0
    %520 = vmatprep.mubr.bf16.mxu0 0
    %521 = vmatmul.mubr.bf16.gmra.mrb[0].mxu0 %v412
    %v522 = vpop.f32.mrb[0].mxu0
    %v523 = vadd.f32 0.0, %v522
    %v524 = vpop.f32.mrb[0].mxu0
    %v525 = vpop.f32.mrb[0].mxu0
    %v526 = vadd.f32 0.0, %v525
    %v527 = vpop.f32.mrb[0].mxu0
    %528 = vmatprep.mubr.bf16.mxu0 0
    %529 = vmatmul.mubr.bf16.gmra.mrb[0].mxu0 %v415
    %v530 = vpop.f32.mrb[0].mxu0
    %v531 = vadd.f32 0.0, %v530
    %v532 = vpop.f32.mrb[0].mxu0
    %v533 = vpop.f32.mrb[0].mxu0
    %v534 = vadd.f32 0.0, %v533
    %v535 = vpop.f32.mrb[0].mxu0
    %536 = vmatprep.mubr.bf16.mxu0 0
    %537 = vmatmul.mubr.bf16.gmra.mrb[0].mxu0 %v418
    %v538 = vpop.f32.mrb[0].mxu0
    %v539 = vadd.f32 0.0, %v538
    %v540 = vpop.f32.mrb[0].mxu0
    %v541 = vpop.f32.mrb[0].mxu0
    %v542 = vadd.f32 0.0, %v541
    %v543 = vpop.f32.mrb[0].mxu0
    %544 = vmatprep.mubr.bf16.mxu0 0
    %545 = vmatmul.mubr.bf16.gmra.mrb[0].mxu0 %v421
    %v546 = vpop.f32.mrb[0].mxu0
    %v547 = vadd.f32 0.0, %v546
    %v548 = vpop.f32.mrb[0].mxu0
    %v549 = vpop.f32.mrb[0].mxu0
    %v550 = vadd.f32 0.0, %v549
    %v551 = vpop.f32.mrb[0].mxu0
    %552 = vmatprep.mubr.bf16.mxu0 0
    %553 = vmatmul.mubr.bf16.gmra.mrb[0].mxu0 %v424
    %v554 = vpop.f32.mrb[0].mxu0
    %v555 = vadd.f32 0.0, %v554
    %v556 = vpop.f32.mrb[0].mxu0
    %v557 = vpop.f32.mrb[0].mxu0
    %v558 = vadd.f32 0.0, %v557
    %v559 = vpop.f32.mrb[0].mxu0
    %560 = vmatprep.mubr.bf16.mxu0 0
    %561 = vmatmul.mubr.bf16.gmra.mrb[0].mxu0 %v427
    %v562 = vpop.f32.mrb[0].mxu0
    %v563 = vadd.f32 0.0, %v562
    %v564 = vpop.f32.mrb[0].mxu0
    %v565 = vpop.f32.mrb[0].mxu0
    %v566 = vadd.f32 0.0, %v565
    %v567 = vpop.f32.mrb[0].mxu0
    %568 = vmatprep.mubr.bf16.mxu0 0
    %569 = vmatmul.mubr.bf16.gmra.mrb[0].mxu0 %v430
    %v570 = vpop.f32.mrb[0].mxu0
    %v571 = vadd.f32 0.0, %v570
    %v572 = vpop.f32.mrb[0].mxu0
    %v573 = vpop.f32.mrb[0].mxu0
    %v574 = vadd.f32 0.0, %v573
    %v575 = vpop.f32.mrb[0].mxu0
    %576 = vmatprep.mubr.bf16.mxu0 0
    %577 = vmatmul.mubr.bf16.gmra.mrb[0].mxu0 %v433
    %v578 = vpop.f32.mrb[0].mxu0
    %v579 = vadd.f32 0.0, %v578
    %v580 = vpop.f32.mrb[0].mxu0
    %v581 = vpop.f32.mrb[0].mxu0
    %v582 = vadd.f32 0.0, %v581
    %v583 = vpop.f32.mrb[0].mxu0
    %584 = vmatprep.mubr.bf16.mxu0 0
    %585 = vmatmul.mubr.bf16.gmra.mrb[0].mxu0 %v436
    %v586 = vpop.f32.mrb[0].mxu0
    %v587 = vadd.f32 0.0, %v586
    %v588 = vpop.f32.mrb[0].mxu0
    %v589 = vpop.f32.mrb[0].mxu0
    %v590 = vadd.f32 0.0, %v589
    %v591 = vpop.f32.mrb[0].mxu0
    %592 = vmatprep.mubr.bf16.mxu0 0
    %593 = vmatmul.mubr.bf16.gmra.mrb[0].mxu0 %v439
    %v594 = vpop.f32.mrb[0].mxu0
    %v595 = vadd.f32 0.0, %v594
    %v596 = vpop.f32.mrb[0].mxu0
    %v597 = vpop.f32.mrb[0].mxu0
    %v598 = vadd.f32 0.0, %v597
    %v599 = vpop.f32.mrb[0].mxu0
    %600 = vmatprep.mubr.bf16.mxu0 0
    %601 = vmatmul.mubr.bf16.gmra.mrb[0].mxu0 %v442
    %v602 = vpop.f32.mrb[0].mxu0
    %v603 = vadd.f32 0.0, %v602
    %v604 = vpop.f32.mrb[0].mxu0
    %v605 = vpop.f32.mrb[0].mxu0
    %v606 = vadd.f32 0.0, %v605
    %v607 = vpop.f32.mrb[0].mxu0
    %608 = vdwg.mxu0
    %v609 = vmul.f32 %v483, 2.0
    %v610 = vmul.f32 %v486, 2.0
    %v611 = vmul.f32 %v491, 2.0
    %v612 = vmul.f32 %v494, 2.0
    %v613 = vmul.f32 %v499, 2.0
    %v614 = vmul.f32 %v502, 2.0
    %v615 = vmul.f32 %v507, 2.0
    %v616 = vmul.f32 %v510, 2.0
    %v617 = vmul.f32 %v515, 2.0
    %v618 = vmul.f32 %v518, 2.0
    %v619 = vmul.f32 %v523, 2.0
    %v620 = vmul.f32 %v526, 2.0
    %v621 = vmul.f32 %v531, 2.0
    %v622 = vmul.f32 %v534, 2.0
    %v623 = vmul.f32 %v539, 2.0
    %v624 = vmul.f32 %v542, 2.0
    %v625 = vmul.f32 %v547, 2.0
    %v626 = vmul.f32 %v550, 2.0
    %v627 = vmul.f32 %v555, 2.0
    %v628 = vmul.f32 %v558, 2.0
    %v629 = vmul.f32 %v563, 2.0
    %v630 = vmul.f32 %v566, 2.0
    %v631 = vmul.f32 %v571, 2.0
    %v632 = vmul.f32 %v574, 2.0
    %v633 = vmul.f32 %v579, 2.0
    %v634 = vmul.f32 %v582, 2.0
    %v635 = vmul.f32 %v587, 2.0
    %v636 = vmul.f32 %v590, 2.0
    %v637 = vmul.f32 %v595, 2.0
    %v638 = vmul.f32 %v598, 2.0
    %v639 = vmul.f32 %v603, 2.0
    %v640 = vmul.f32 %v606, 2.0
    %v657 = vunpack.c.l.b16 %v137
    %v658 = vunpack.c.l.b16 %v138
    %v659 = vunpack.c.l.b16 %v139
    %v660 = vunpack.c.l.b16 %v140
    %v661 = vunpack.c.l.b16 %v141
    %v662 = vunpack.c.l.b16 %v142
    %v663 = vunpack.c.l.b16 %v143
    %v664 = vunpack.c.l.b16 %v144
    %v665 = vunpack.c.l.b16 %v145
    %v666 = vunpack.c.l.b16 %v146
    %v667 = vunpack.c.l.b16 %v147
    %v668 = vunpack.c.l.b16 %v148
    %v669 = vunpack.c.l.b16 %v149
    %v670 = vunpack.c.l.b16 %v150
    %v671 = vunpack.c.l.b16 %v151
    %v672 = vunpack.c.l.b16 %v152
    %v673 = vpack.c.b16 %v658, %v657
    %v674 = vpack.c.b16 %v660, %v659
    %v675 = vpack.c.b16 %v662, %v661
    %v676 = vpack.c.b16 %v664, %v663
    %v677 = vpack.c.b16 %v666, %v665
    %v678 = vpack.c.b16 %v668, %v667
    %v679 = vpack.c.b16 %v670, %v669
    %v680 = vpack.c.b16 %v672, %v671
    %689 = vmatprep.subr.bf16.mxu0 0
    %690 = vmatpush1.bf16.msra.mxu0 %v673
    %691 = vmatprep.subr.bf16.mxu0 0
    %692 = vmatpush1.bf16.msra.mxu0 %v674
    %693 = vmatprep.subr.bf16.mxu0 0
    %694 = vmatpush1.bf16.msra.mxu0 %v675
    %695 = vmatprep.subr.bf16.mxu0 0
    %696 = vmatpush1.bf16.msra.mxu0 %v676
    %697 = vmatprep.subr.bf16.mxu0 0
    %698 = vmatpush1.bf16.msra.mxu0 %v677
    %699 = vmatprep.subr.bf16.mxu0 0
    %700 = vmatpush1.bf16.msra.mxu0 %v678
    %701 = vmatprep.subr.bf16.mxu0 0
    %702 = vmatpush1.bf16.msra.mxu0 %v679
    %703 = vmatprep.subr.bf16.mxu0 0
    %704 = vmatpush1.bf16.msra.mxu0 %v680
    %705 = vmatprep.subr.bf16.mxu0 0
    %706 = vmatpush1.bf16.msra.mxu0 0
    %707 = vmatprep.subr.bf16.mxu0 0
    %708 = vmatpush1.bf16.msra.mxu0 0
    %709 = vmatprep.subr.bf16.mxu0 0
    %710 = vmatpush1.bf16.msra.mxu0 0
    %711 = vmatprep.subr.bf16.mxu0 0
    %712 = vmatpush1.bf16.msra.mxu0 0
    %713 = vmatprep.subr.bf16.mxu0 0
    %714 = vmatpush1.bf16.msra.mxu0 0
    %715 = vmatprep.subr.bf16.mxu0 0
    %716 = vmatpush1.bf16.msra.mxu0 0
    %717 = vmatprep.subr.bf16.mxu0 0
    %718 = vmatpush1.bf16.msra.mxu0 0
    %719 = vmatprep.subr.bf16.mxu0 0
    %720 = vmatpush1.bf16.msra.mxu0 0
    %721 = vmatprep.mubr.bf16.mxu0 0
    %722 = vmatmul.mubr.bf16.gmra.mrb[0].mxu0 %v121
    %v723 = vpop.f32.mrb[0].mxu0
    %v724 = vadd.f32 %v609, %v723
    %v725 = vpop.f32.mrb[0].mxu0
    %v726 = vpop.f32.mrb[0].mxu0
    %v727 = vadd.f32 %v610, %v726
    %v728 = vpop.f32.mrb[0].mxu0
    %729 = vmatprep.mubr.bf16.mxu0 0
    %730 = vmatmul.mubr.bf16.gmra.mrb[0].mxu0 %v122
    %v731 = vpop.f32.mrb[0].mxu0
    %v732 = vadd.f32 %v611, %v731
    %v733 = vpop.f32.mrb[0].mxu0
    %v734 = vpop.f32.mrb[0].mxu0
    %v735 = vadd.f32 %v612, %v734
    %v736 = vpop.f32.mrb[0].mxu0
    %737 = vmatprep.mubr.bf16.mxu0 0
    %738 = vmatmul.mubr.bf16.gmra.mrb[0].mxu0 %v123
    %v739 = vpop.f32.mrb[0].mxu0
    %v740 = vadd.f32 %v613, %v739
    %v741 = vpop.f32.mrb[0].mxu0
    %v742 = vpop.f32.mrb[0].mxu0
    %v743 = vadd.f32 %v614, %v742
    %v744 = vpop.f32.mrb[0].mxu0
    %745 = vmatprep.mubr.bf16.mxu0 0
    %746 = vmatmul.mubr.bf16.gmra.mrb[0].mxu0 %v124
    %v747 = vpop.f32.mrb[0].mxu0
    %v748 = vadd.f32 %v615, %v747
    %v749 = vpop.f32.mrb[0].mxu0
    %v750 = vpop.f32.mrb[0].mxu0
    %v751 = vadd.f32 %v616, %v750
    %v752 = vpop.f32.mrb[0].mxu0
    %753 = vmatprep.mubr.bf16.mxu0 0
    %754 = vmatmul.mubr.bf16.gmra.mrb[0].mxu0 %v125
    %v755 = vpop.f32.mrb[0].mxu0
    %v756 = vadd.f32 %v617, %v755
    %v757 = vpop.f32.mrb[0].mxu0
    %v758 = vpop.f32.mrb[0].mxu0
    %v759 = vadd.f32 %v618, %v758
    %v760 = vpop.f32.mrb[0].mxu0
    %761 = vmatprep.mubr.bf16.mxu0 0
    %762 = vmatmul.mubr.bf16.gmra.mrb[0].mxu0 %v126
    %v763 = vpop.f32.mrb[0].mxu0
    %v764 = vadd.f32 %v619, %v763
    %v765 = vpop.f32.mrb[0].mxu0
    %v766 = vpop.f32.mrb[0].mxu0
    %v767 = vadd.f32 %v620, %v766
    %v768 = vpop.f32.mrb[0].mxu0
    %769 = vmatprep.mubr.bf16.mxu0 0
    %770 = vmatmul.mubr.bf16.gmra.mrb[0].mxu0 %v127
    %v771 = vpop.f32.mrb[0].mxu0
    %v772 = vadd.f32 %v621, %v771
    %v773 = vpop.f32.mrb[0].mxu0
    %v774 = vpop.f32.mrb[0].mxu0
    %v775 = vadd.f32 %v622, %v774
    %v776 = vpop.f32.mrb[0].mxu0
    %777 = vmatprep.mubr.bf16.mxu0 0
    %778 = vmatmul.mubr.bf16.gmra.mrb[0].mxu0 %v128
    %v779 = vpop.f32.mrb[0].mxu0
    %v780 = vadd.f32 %v623, %v779
    %v781 = vpop.f32.mrb[0].mxu0
    %v782 = vpop.f32.mrb[0].mxu0
    %v783 = vadd.f32 %v624, %v782
    %v784 = vpop.f32.mrb[0].mxu0
    %785 = vmatprep.mubr.bf16.mxu0 0
    %786 = vmatmul.mubr.bf16.gmra.mrb[0].mxu0 %v129
    %v787 = vpop.f32.mrb[0].mxu0
    %v788 = vadd.f32 %v625, %v787
    %v789 = vpop.f32.mrb[0].mxu0
    %v790 = vpop.f32.mrb[0].mxu0
    %v791 = vadd.f32 %v626, %v790
    %v792 = vpop.f32.mrb[0].mxu0
    %793 = vmatprep.mubr.bf16.mxu0 0
    %794 = vmatmul.mubr.bf16.gmra.mrb[0].mxu0 %v130
    %v795 = vpop.f32.mrb[0].mxu0
    %v796 = vadd.f32 %v627, %v795
    %v797 = vpop.f32.mrb[0].mxu0
    %v798 = vpop.f32.mrb[0].mxu0
    %v799 = vadd.f32 %v628, %v798
    %v800 = vpop.f32.mrb[0].mxu0
    %801 = vmatprep.mubr.bf16.mxu0 0
    %802 = vmatmul.mubr.bf16.gmra.mrb[0].mxu0 %v131
    %v803 = vpop.f32.mrb[0].mxu0
    %v804 = vadd.f32 %v629, %v803
    %v805 = vpop.f32.mrb[0].mxu0
    %v806 = vpop.f32.mrb[0].mxu0
    %v807 = vadd.f32 %v630, %v806
    %v808 = vpop.f32.mrb[0].mxu0
    %809 = vmatprep.mubr.bf16.mxu0 0
    %810 = vmatmul.mubr.bf16.gmra.mrb[0].mxu0 %v132
    %v811 = vpop.f32.mrb[0].mxu0
    %v812 = vadd.f32 %v631, %v811
    %v813 = vpop.f32.mrb[0].mxu0
    %v814 = vpop.f32.mrb[0].mxu0
    %v815 = vadd.f32 %v632, %v814
    %v816 = vpop.f32.mrb[0].mxu0
    %817 = vmatprep.mubr.bf16.mxu0 0
    %818 = vmatmul.mubr.bf16.gmra.mrb[0].mxu0 %v133
    %v819 = vpop.f32.mrb[0].mxu0
    %v820 = vadd.f32 %v633, %v819
    %v821 = vpop.f32.mrb[0].mxu0
    %v822 = vpop.f32.mrb[0].mxu0
    %v823 = vadd.f32 %v634, %v822
    %v824 = vpop.f32.mrb[0].mxu0
    %825 = vmatprep.mubr.bf16.mxu0 0
    %826 = vmatmul.mubr.bf16.gmra.mrb[0].mxu0 %v134
    %v827 = vpop.f32.mrb[0].mxu0
    %v828 = vadd.f32 %v635, %v827
    %v829 = vpop.f32.mrb[0].mxu0
    %v830 = vpop.f32.mrb[0].mxu0
    %v831 = vadd.f32 %v636, %v830
    %v832 = vpop.f32.mrb[0].mxu0
    %833 = vmatprep.mubr.bf16.mxu0 0
    %834 = vmatmul.mubr.bf16.gmra.mrb[0].mxu0 %v135
    %v835 = vpop.f32.mrb[0].mxu0
    %v836 = vadd.f32 %v637, %v835
    %v837 = vpop.f32.mrb[0].mxu0
    %v838 = vpop.f32.mrb[0].mxu0
    %v839 = vadd.f32 %v638, %v838
    %v840 = vpop.f32.mrb[0].mxu0
    %841 = vmatprep.mubr.bf16.mxu0 0
    %842 = vmatmul.mubr.bf16.gmra.mrb[0].mxu0 %v136
    %v843 = vpop.f32.mrb[0].mxu0
    %v844 = vadd.f32 %v639, %v843
    %v845 = vpop.f32.mrb[0].mxu0
    %v846 = vpop.f32.mrb[0].mxu0
    %v847 = vadd.f32 %v640, %v846
    %v848 = vpop.f32.mrb[0].mxu0
    %849 = vdwg.mxu0
    %v850 = vld [vmem:[%s2] sm:$0x1]
    %v852 = vlaneseq
    %v853 = vshrl.u32 %v852, 7
    %v854 = vsub.s32 0, %v853
    %v855 = vrot.slane %v850, %v854
    %v857 = vadd.f32 %v724, %v855
    %v858 = vadd.f32 %v727, %v855
    %v859 = vadd.f32 %v732, %v855
    %v860 = vadd.f32 %v735, %v855
    %v861 = vadd.f32 %v740, %v855
    %v862 = vadd.f32 %v743, %v855
    %v863 = vadd.f32 %v748, %v855
    %v864 = vadd.f32 %v751, %v855
    %v865 = vadd.f32 %v756, %v855
    %v866 = vadd.f32 %v759, %v855
    %v867 = vadd.f32 %v764, %v855
    %v868 = vadd.f32 %v767, %v855
    %v869 = vadd.f32 %v772, %v855
    %v870 = vadd.f32 %v775, %v855
    %v871 = vadd.f32 %v780, %v855
    %v872 = vadd.f32 %v783, %v855
    %v873 = vadd.f32 %v788, %v855
    %v874 = vadd.f32 %v791, %v855
    %v875 = vadd.f32 %v796, %v855
    %v876 = vadd.f32 %v799, %v855
    %v877 = vadd.f32 %v804, %v855
    %v878 = vadd.f32 %v807, %v855
    %v879 = vadd.f32 %v812, %v855
    %v880 = vadd.f32 %v815, %v855
    %v881 = vadd.f32 %v820, %v855
    %v882 = vadd.f32 %v823, %v855
    %v883 = vadd.f32 %v828, %v855
    %v884 = vadd.f32 %v831, %v855
    %v885 = vadd.f32 %v836, %v855
    %v886 = vadd.f32 %v839, %v855
    %v887 = vadd.f32 %v844, %v855
    %v888 = vadd.f32 %v847, %v855
    %v889 = vld [vmem:[#allocation6] sm:$0xff]
    %v890 = vld [vmem:[#allocation6 + $0x8] sm:$0xff]
    %v891 = vld [vmem:[#allocation6 + $0x10] sm:$0xff]
    %v892 = vld [vmem:[#allocation6 + $0x18] sm:$0xff]
    %v893 = vld [vmem:[#allocation6 + $0x20] sm:$0xff]
    %v894 = vld [vmem:[#allocation6 + $0x28] sm:$0xff]
    %v895 = vld [vmem:[#allocation6 + $0x30] sm:$0xff]
    %v896 = vld [vmem:[#allocation6 + $0x38] sm:$0xff]
    %v897 = vld [vmem:[#allocation6 + $0x40] sm:$0xff]
    %v898 = vld [vmem:[#allocation6 + $0x48] sm:$0xff]
    %v899 = vld [vmem:[#allocation6 + $0x50] sm:$0xff]
    %v900 = vld [vmem:[#allocation6 + $0x58] sm:$0xff]
    %v901 = vld [vmem:[#allocation6 + $0x60] sm:$0xff]
    %v902 = vld [vmem:[#allocation6 + $0x68] sm:$0xff]
    %v903 = vld [vmem:[#allocation6 + $0x70] sm:$0xff]
    %v904 = vld [vmem:[#allocation6 + $0x78] sm:$0xff]
    %v905 = vld [vmem:[#allocation6 + $0x80] sm:$0xff]
    %v906 = vld [vmem:[#allocation6 + $0x88] sm:$0xff]
    %v907 = vld [vmem:[#allocation6 + $0x90] sm:$0xff]
    %v908 = vld [vmem:[#allocation6 + $0x98] sm:$0xff]
    %v909 = vld [vmem:[#allocation6 + $0xa0] sm:$0xff]
    %v910 = vld [vmem:[#allocation6 + $0xa8] sm:$0xff]
    %v911 = vld [vmem:[#allocation6 + $0xb0] sm:$0xff]
    %v912 = vld [vmem:[#allocation6 + $0xb8] sm:$0xff]
    %v913 = vld [vmem:[#allocation6 + $0xc0] sm:$0xff]
    %v914 = vld [vmem:[#allocation6 + $0xc8] sm:$0xff]
    %v915 = vld [vmem:[#allocation6 + $0xd0] sm:$0xff]
    %v916 = vld [vmem:[#allocation6 + $0xd8] sm:$0xff]
    %v917 = vld [vmem:[#allocation6 + $0xe0] sm:$0xff]
    %v918 = vld [vmem:[#allocation6 + $0xe8] sm:$0xff]
    %v919 = vld [vmem:[#allocation6 + $0xf0] sm:$0xff]
    %v920 = vld [vmem:[#allocation6 + $0xf8] sm:$0xff]
    %v921 = vsub.f32 %v857, %v889
    %v922 = vsub.f32 %v858, %v890
    %v923 = vsub.f32 %v859, %v891
    %v924 = vsub.f32 %v860, %v892
    %v925 = vsub.f32 %v861, %v893
    %v926 = vsub.f32 %v862, %v894
    %v927 = vsub.f32 %v863, %v895
    %v928 = vsub.f32 %v864, %v896
    %v929 = vsub.f32 %v865, %v897
    %v930 = vsub.f32 %v866, %v898
    %v931 = vsub.f32 %v867, %v899
    %v932 = vsub.f32 %v868, %v900
    %v933 = vsub.f32 %v869, %v901
    %v934 = vsub.f32 %v870, %v902
    %v935 = vsub.f32 %v871, %v903
    %v936 = vsub.f32 %v872, %v904
    %v937 = vsub.f32 %v873, %v905
    %v938 = vsub.f32 %v874, %v906
    %v939 = vsub.f32 %v875, %v907
    %v940 = vsub.f32 %v876, %v908
    %v941 = vsub.f32 %v877, %v909
    %v942 = vsub.f32 %v878, %v910
    %v943 = vsub.f32 %v879, %v911
    %v944 = vsub.f32 %v880, %v912
    %v945 = vsub.f32 %v881, %v913
    %v946 = vsub.f32 %v882, %v914
    %v947 = vsub.f32 %v883, %v915
    %v948 = vsub.f32 %v884, %v916
    %v949 = vsub.f32 %v885, %v917
    %v950 = vsub.f32 %v886, %v918
    %v951 = vsub.f32 %v887, %v919
    %v952 = vsub.f32 %v888, %v920
    %v953 = vld [vmem:[#allocation2] sm:$0xff]
    %v954 = vld [vmem:[#allocation2 + $0x8] sm:$0xff]
    %v955 = vld [vmem:[#allocation2 + $0x10] sm:$0xff]
    %v956 = vld [vmem:[#allocation2 + $0x18] sm:$0xff]
    %v957 = vld [vmem:[#allocation2 + $0x20] sm:$0xff]
    %v958 = vld [vmem:[#allocation2 + $0x28] sm:$0xff]
    %v959 = vld [vmem:[#allocation2 + $0x30] sm:$0xff]
    %v960 = vld [vmem:[#allocation2 + $0x38] sm:$0xff]
    %v961 = vld [vmem:[#allocation2 + $0x40] sm:$0xff]
    %v962 = vld [vmem:[#allocation2 + $0x48] sm:$0xff]
    %v963 = vld [vmem:[#allocation2 + $0x50] sm:$0xff]
    %v964 = vld [vmem:[#allocation2 + $0x58] sm:$0xff]
    %v965 = vld [vmem:[#allocation2 + $0x60] sm:$0xff]
    %v966 = vld [vmem:[#allocation2 + $0x68] sm:$0xff]
    %v967 = vld [vmem:[#allocation2 + $0x70] sm:$0xff]
    %v968 = vld [vmem:[#allocation2 + $0x78] sm:$0xff]
    %v969 = vld [vmem:[#allocation2 + $0x80] sm:$0xff]
    %v970 = vld [vmem:[#allocation2 + $0x88] sm:$0xff]
    %v971 = vld [vmem:[#allocation2 + $0x90] sm:$0xff]
    %v972 = vld [vmem:[#allocation2 + $0x98] sm:$0xff]
    %v973 = vld [vmem:[#allocation2 + $0xa0] sm:$0xff]
    %v974 = vld [vmem:[#allocation2 + $0xa8] sm:$0xff]
    %v975 = vld [vmem:[#allocation2 + $0xb0] sm:$0xff]
    %v976 = vld [vmem:[#allocation2 + $0xb8] sm:$0xff]
    %v977 = vld [vmem:[#allocation2 + $0xc0] sm:$0xff]
    %v978 = vld [vmem:[#allocation2 + $0xc8] sm:$0xff]
    %v979 = vld [vmem:[#allocation2 + $0xd0] sm:$0xff]
    %v980 = vld [vmem:[#allocation2 + $0xd8] sm:$0xff]
    %v981 = vld [vmem:[#allocation2 + $0xe0] sm:$0xff]
    %v982 = vld [vmem:[#allocation2 + $0xe8] sm:$0xff]
    %v983 = vld [vmem:[#allocation2 + $0xf0] sm:$0xff]
    %v984 = vld [vmem:[#allocation2 + $0xf8] sm:$0xff]
    %v985 = vmul.f32 %v921, %v921
    %v986 = vmul.f32 %v922, %v922
    %v987 = vmul.f32 %v923, %v923
    %v988 = vmul.f32 %v924, %v924
    %v989 = vmul.f32 %v925, %v925
    %v990 = vmul.f32 %v926, %v926
    %v991 = vmul.f32 %v927, %v927
    %v992 = vmul.f32 %v928, %v928
    %v993 = vmul.f32 %v929, %v929
    %v994 = vmul.f32 %v930, %v930
    %v995 = vmul.f32 %v931, %v931
    %v996 = vmul.f32 %v932, %v932
    %v997 = vmul.f32 %v933, %v933
    %v998 = vmul.f32 %v934, %v934
    %v999 = vmul.f32 %v935, %v935
    %v1000 = vmul.f32 %v936, %v936
    %v1001 = vmul.f32 %v937, %v937
    %v1002 = vmul.f32 %v938, %v938
    %v1003 = vmul.f32 %v939, %v939
    %v1004 = vmul.f32 %v940, %v940
    %v1005 = vmul.f32 %v941, %v941
    %v1006 = vmul.f32 %v942, %v942
    %v1007 = vmul.f32 %v943, %v943
    %v1008 = vmul.f32 %v944, %v944
    %v1009 = vmul.f32 %v945, %v945
    %v1010 = vmul.f32 %v946, %v946
    %v1011 = vmul.f32 %v947, %v947
    %v1012 = vmul.f32 %v948, %v948
    %v1013 = vmul.f32 %v949, %v949
    %v1014 = vmul.f32 %v950, %v950
    %v1015 = vmul.f32 %v951, %v951
    %v1016 = vmul.f32 %v952, %v952
    %v1017 = vadd.f32 %v953, %v985
    %v1018 = vadd.f32 %v954, %v986
    %v1019 = vadd.f32 %v955, %v987
    %v1020 = vadd.f32 %v956, %v988
    %v1021 = vadd.f32 %v957, %v989
    %v1022 = vadd.f32 %v958, %v990
    %v1023 = vadd.f32 %v959, %v991
    %v1024 = vadd.f32 %v960, %v992
    %v1025 = vadd.f32 %v961, %v993
    %v1026 = vadd.f32 %v962, %v994
    %v1027 = vadd.f32 %v963, %v995
    %v1028 = vadd.f32 %v964, %v996
    %v1029 = vadd.f32 %v965, %v997
    %v1030 = vadd.f32 %v966, %v998
    %v1031 = vadd.f32 %v967, %v999
    %v1032 = vadd.f32 %v968, %v1000
    %v1033 = vadd.f32 %v969, %v1001
    %v1034 = vadd.f32 %v970, %v1002
    %v1035 = vadd.f32 %v971, %v1003
    %v1036 = vadd.f32 %v972, %v1004
    %v1037 = vadd.f32 %v973, %v1005
    %v1038 = vadd.f32 %v974, %v1006
    %v1039 = vadd.f32 %v975, %v1007
    %v1040 = vadd.f32 %v976, %v1008
    %v1041 = vadd.f32 %v977, %v1009
    %v1042 = vadd.f32 %v978, %v1010
    %v1043 = vadd.f32 %v979, %v1011
    %v1044 = vadd.f32 %v980, %v1012
    %v1045 = vadd.f32 %v981, %v1013
    %v1046 = vadd.f32 %v982, %v1014
    %v1047 = vadd.f32 %v983, %v1015
    %v1048 = vadd.f32 %v984, %v1016
    %1049 = vst [vmem:[#allocation2] sm:$0xff] %v1017
    %1050 = vst [vmem:[#allocation2 + $0x8] sm:$0xff] %v1018
    %1051 = vst [vmem:[#allocation2 + $0x10] sm:$0xff] %v1019
    %1052 = vst [vmem:[#allocation2 + $0x18] sm:$0xff] %v1020
    %1053 = vst [vmem:[#allocation2 + $0x20] sm:$0xff] %v1021
    %1054 = vst [vmem:[#allocation2 + $0x28] sm:$0xff] %v1022
    %1055 = vst [vmem:[#allocation2 + $0x30] sm:$0xff] %v1023
    %1056 = vst [vmem:[#allocation2 + $0x38] sm:$0xff] %v1024
    %1057 = vst [vmem:[#allocation2 + $0x40] sm:$0xff] %v1025
    %1058 = vst [vmem:[#allocation2 + $0x48] sm:$0xff] %v1026
    %1059 = vst [vmem:[#allocation2 + $0x50] sm:$0xff] %v1027
    %1060 = vst [vmem:[#allocation2 + $0x58] sm:$0xff] %v1028
    %1061 = vst [vmem:[#allocation2 + $0x60] sm:$0xff] %v1029
    %1062 = vst [vmem:[#allocation2 + $0x68] sm:$0xff] %v1030
    %1063 = vst [vmem:[#allocation2 + $0x70] sm:$0xff] %v1031
    %1064 = vst [vmem:[#allocation2 + $0x78] sm:$0xff] %v1032
    %1065 = vst [vmem:[#allocation2 + $0x80] sm:$0xff] %v1033
    %1066 = vst [vmem:[#allocation2 + $0x88] sm:$0xff] %v1034
    %1067 = vst [vmem:[#allocation2 + $0x90] sm:$0xff] %v1035
    %1068 = vst [vmem:[#allocation2 + $0x98] sm:$0xff] %v1036
    %1069 = vst [vmem:[#allocation2 + $0xa0] sm:$0xff] %v1037
    %1070 = vst [vmem:[#allocation2 + $0xa8] sm:$0xff] %v1038
    %1071 = vst [vmem:[#allocation2 + $0xb0] sm:$0xff] %v1039
    %1072 = vst [vmem:[#allocation2 + $0xb8] sm:$0xff] %v1040
    %1073 = vst [vmem:[#allocation2 + $0xc0] sm:$0xff] %v1041
    %1074 = vst [vmem:[#allocation2 + $0xc8] sm:$0xff] %v1042
    %1075 = vst [vmem:[#allocation2 + $0xd0] sm:$0xff] %v1043
    %1076 = vst [vmem:[#allocation2 + $0xd8] sm:$0xff] %v1044
    %1077 = vst [vmem:[#allocation2 + $0xe0] sm:$0xff] %v1045
    %1078 = vst [vmem:[#allocation2 + $0xe8] sm:$0xff] %v1046
    %1079 = vst [vmem:[#allocation2 + $0xf0] sm:$0xff] %v1047
    %1080 = vst [vmem:[#allocation2 + $0xf8] sm:$0xff] %v1048
    // Predicated region
    $region38: #{tpu_custom_call.1} parent=1 // pred_check
      %p1081 = pneg %p53
    $region39: #{tpu_custom_call.1} parent=1 // pred_check_branch
      %1083 = sbr.rel (%p1081) target = $region41
    $region40: #{tpu_custom_call.1} parent=1 // pred_region
      %v1084 = vld [vmem:[#allocation2] sm:$0xff]
      %v1085 = vld [vmem:[#allocation2 + $0x8] sm:$0xff]
      %v1086 = vld [vmem:[#allocation2 + $0x10] sm:$0xff]
      %v1087 = vld [vmem:[#allocation2 + $0x18] sm:$0xff]
      %v1088 = vld [vmem:[#allocation2 + $0x20] sm:$0xff]
      %v1089 = vld [vmem:[#allocation2 + $0x28] sm:$0xff]
      %v1090 = vld [vmem:[#allocation2 + $0x30] sm:$0xff]
      %v1091 = vld [vmem:[#allocation2 + $0x38] sm:$0xff]
      %v1092 = vld [vmem:[#allocation2 + $0x40] sm:$0xff]
      %v1093 = vld [vmem:[#allocation2 + $0x48] sm:$0xff]
      %v1094 = vld [vmem:[#allocation2 + $0x50] sm:$0xff]
      %v1095 = vld [vmem:[#allocation2 + $0x58] sm:$0xff]
      %v1096 = vld [vmem:[#allocation2 + $0x60] sm:$0xff]
      %v1097 = vld [vmem:[#allocation2 + $0x68] sm:$0xff]
      %v1098 = vld [vmem:[#allocation2 + $0x70] sm:$0xff]
      %v1099 = vld [vmem:[#allocation2 + $0x78] sm:$0xff]
      %v1100 = vld [vmem:[#allocation2 + $0x80] sm:$0xff]
      %v1101 = vld [vmem:[#allocation2 + $0x88] sm:$0xff]
      %v1102 = vld [vmem:[#allocation2 + $0x90] sm:$0xff]
      %v1103 = vld [vmem:[#allocation2 + $0x98] sm:$0xff]
      %v1104 = vld [vmem:[#allocation2 + $0xa0] sm:$0xff]
      %v1105 = vld [vmem:[#allocation2 + $0xa8] sm:$0xff]
      %v1106 = vld [vmem:[#allocation2 + $0xb0] sm:$0xff]
      %v1107 = vld [vmem:[#allocation2 + $0xb8] sm:$0xff]
      %v1108 = vld [vmem:[#allocation2 + $0xc0] sm:$0xff]
      %v1109 = vld [vmem:[#allocation2 + $0xc8] sm:$0xff]
      %v1110 = vld [vmem:[#allocation2 + $0xd0] sm:$0xff]
      %v1111 = vld [vmem:[#allocation2 + $0xd8] sm:$0xff]
      %v1112 = vld [vmem:[#allocation2 + $0xe0] sm:$0xff]
      %v1113 = vld [vmem:[#allocation2 + $0xe8] sm:$0xff]
      %v1114 = vld [vmem:[#allocation2 + $0xf0] sm:$0xff]
      %v1115 = vld [vmem:[#allocation2 + $0xf8] sm:$0xff]
      %v1116 = vadd.f32 %v1084, %v1085
      %v1117 = vadd.f32 %v1116, %v1086
      %v1118 = vadd.f32 %v1117, %v1087
      %v1119 = vadd.f32 %v1118, %v1088
      %v1120 = vadd.f32 %v1119, %v1089
      %v1121 = vadd.f32 %v1120, %v1090
      %v1122 = vadd.f32 %v1121, %v1091
      %v1123 = vadd.f32 %v1122, %v1092
      %v1124 = vadd.f32 %v1123, %v1093
      %v1125 = vadd.f32 %v1124, %v1094
      %v1126 = vadd.f32 %v1125, %v1095
      %v1127 = vadd.f32 %v1126, %v1096
      %v1128 = vadd.f32 %v1127, %v1097
      %v1129 = vadd.f32 %v1128, %v1098
      %v1130 = vadd.f32 %v1129, %v1099
      %v1131 = vadd.f32 %v1130, %v1100
      %v1132 = vadd.f32 %v1131, %v1101
      %v1133 = vadd.f32 %v1132, %v1102
      %v1134 = vadd.f32 %v1133, %v1103
      %v1135 = vadd.f32 %v1134, %v1104
      %v1136 = vadd.f32 %v1135, %v1105
      %v1137 = vadd.f32 %v1136, %v1106
      %v1138 = vadd.f32 %v1137, %v1107
      %v1139 = vadd.f32 %v1138, %v1108
      %v1140 = vadd.f32 %v1139, %v1109
      %v1141 = vadd.f32 %v1140, %v1110
      %v1142 = vadd.f32 %v1141, %v1111
      %v1143 = vadd.f32 %v1142, %v1112
      %v1144 = vadd.f32 %v1143, %v1113
      %v1145 = vadd.f32 %v1144, %v1114
      %v1146 = vadd.f32 %v1145, %v1115
      %1147 = vadd.xlane.f32.xlu0 %v1146
      %v1148 = vpop.xlane.xlu0 %1147
      %v1149 = vrot.slane %v1148, 4
      %v1150 = vadd.f32 %v1148, %v1149
      %v1151 = vrot.slane %v1150, 2
      %v1152 = vadd.f32 %v1150, %v1151
      %v1153 = vrot.slane %v1152, 1
      %v1154 = vadd.f32 %v1152, %v1153
      %s1155 = vtos %v1154
      %s1156 = smul.f32 %s1155, 3.0517578e-05
      %s1157 = scalar_lea.smem [#allocation8], 0
      %1158 = sst [smem:[%s1157]] %s1156
    $region41: #{tpu_custom_call.1} parent=1 // pred_fallthru
      _
    // Predicated region
    $region42: #{tpu_custom_call.1} parent=1 // pred_check
      _
    $region43: #{tpu_custom_call.1} parent=1 // pred_check_branch
      %1160 = sbr.rel (0) target = $region45
    $region44: #{tpu_custom_call.1} parent=1 // pred_region
      %s1162 = ssub.s32 16, 16
      %1163 = vsyncadd [#allocation5], %s1162
      %1166 = dma.smem_to_hbm [#allocation8], 16, %s6, [#allocation5]
    $region45: #{tpu_custom_call.1} parent=1 // pred_fallthru
      _
    // Predicated region
    $region46: #{tpu_custom_call.1} parent=1 // pred_check
      _
    $region47: #{tpu_custom_call.1} parent=1 // pred_check_branch
      %1168 = sbr.rel (0) target = $region49
    $region48: #{tpu_custom_call.1} parent=1 // pred_region
      %1169 = dma.done [#allocation5], 16
    $region49: #{tpu_custom_call.1} parent=1 // pred_fallthru
      _
    %1170 = sfence
    %1171 = vsyncpa [#allocation4], 1
    %1172 = vsyncpa [#allocation7], 1
    %1173 = vsyncpa [#allocation5], 1

</llo_original>
